<compile_context>
chip_gen: v6e
topology: v6e:2x2x1
jax: 0.10.0
libtpu: 0.0.40
codegen_flags: <defaults>
</compile_context>

<pallas_src>
import functools
import math

import jax
import jax.numpy as jnp
from jax import lax
from jax.experimental import pallas as pl
from jax.experimental.pallas import tpu as pltpu


def _broad_mha_kernel(q_ref, k_ref, v_ref, o_ref, *, heads, scale):
    # q_ref: (Q_len, dim), k_ref/v_ref: (K_len, dim), o_ref: (Q_len, dim)
    q = q_ref[...]
    k = k_ref[...]
    v = v_ref[...]
    head_dim = q.shape[-1] // heads

    outs = []
    for h in range(heads):  # static unroll: heads is small and fixed
        lo = h * head_dim
        # fold the softmax scale into q (touches Q_len*head_dim elements only)
        qh = q[:, lo:lo + head_dim] * jnp.asarray(scale, q.dtype)
        kh = k[:, lo:lo + head_dim]
        vh = v[:, lo:lo + head_dim]

        # scores (Q_len, K_len): contract the last dims -> no explicit kh.T,
        # native-dtype operands on the MXU, f32 accumulation.
        s = lax.dot_general(
            qh, kh, (((1,), (1,)), ((), ())),
            preferred_element_type=jnp.float32)

        # numerically-stable softmax over keys, all elementwise math in f32
        m = jnp.max(s, axis=-1, keepdims=True)
        p = jnp.exp(s - m)
        l = jnp.sum(p, axis=-1, keepdims=True)

        # (Q_len, K_len) @ (K_len, head_dim); p cast to v's dtype for MXU rate
        oh = lax.dot_general(
            p.astype(vh.dtype), vh, (((1,), (0,)), ((), ())),
            preferred_element_type=jnp.float32)
        oh = oh * pl.reciprocal(l, approx=True)
        outs.append(oh)

    # one dense, lane-packed store of the full (Q_len, dim) tile
    o_ref[...] = jnp.concatenate(outs, axis=-1).astype(o_ref.dtype)


def broad_multi_head_attention(Q, K, V, heads):
    """Matches BroadMultiHeadAttention.forward.

    Q: (1, Q_len, dim) -- broadcast across the batch of K/V.
    K, V: (B, K_len, dim)
    returns: (B, Q_len, dim)
    """
    _, Q_len, dim = Q.shape
    B, K_len, _ = K.shape
    head_dim = dim // heads
    scale = 1.0 / math.sqrt(head_dim)

    kernel = functools.partial(_broad_mha_kernel, heads=heads, scale=scale)

    return pl.pallas_call(
        kernel,
        out_shape=jax.ShapeDtypeStruct((B, Q_len, dim), Q.dtype),
        grid_spec=pltpu.PrefetchScalarGridSpec(
            num_scalar_prefetch=0,
            grid=(B,),
            in_specs=[
                # query is shared across the batch: constant block index, so
                # the tile is fetched once and kept resident across b.
                pl.BlockSpec((None, Q_len, dim), lambda b: (0, 0, 0)),
                pl.BlockSpec((None, K_len, dim), lambda b: (b, 0, 0)),
                pl.BlockSpec((None, K_len, dim), lambda b: (b, 0, 0)),
            ],
            out_specs=pl.BlockSpec((None, Q_len, dim), lambda b: (b, 0, 0)),
        ),
        compiler_params=pltpu.CompilerParams(
            dimension_semantics=("parallel",),
            vmem_limit_bytes=64 * 1024 * 1024,
        ),
    )(Q, K, V)


def _reference(Q, K, V, heads):
    _, Q_len, dim = Q.shape
    B, K_len, _ = K.shape
    head_dim = dim // heads
    q = jnp.broadcast_to(
        Q.reshape(1, Q_len, heads, head_dim).transpose(0, 2, 1, 3),
        (B, heads, Q_len, head_dim),
    )
    k = K.reshape(B, K_len, heads, head_dim).transpose(0, 2, 1, 3)
    v = V.reshape(B, K_len, heads, head_dim).transpose(0, 2, 1, 3)
    s = jnp.einsum("bhqd,bhkd->bhqk", q, k) / math.sqrt(head_dim)
    p = jax.nn.softmax(s, axis=-1)
    o = jnp.einsum("bhqk,bhkd->bhqd", p, v)
    return o.transpose(0, 2, 1, 3).reshape(B, Q_len, dim)


if __name__ == "__main__":
    # small, deterministic inputs consistent with the module's forward:
    # Q: (1, Q_len, dim), K/V: (B, K_len, dim)
    B, Q_len, K_len, dim, heads = 2, 8, 16, 32, 4
    key = jax.random.PRNGKey(0)
    kq, kk, kv = jax.random.split(key, 3)
    Q = jax.random.normal(kq, (1, Q_len, dim), dtype=jnp.float32)
    K = jax.random.normal(kk, (B, K_len, dim), dtype=jnp.float32)
    V = jax.random.normal(kv, (B, K_len, dim), dtype=jnp.float32)

    out = broad_multi_head_attention(Q, K, V, heads)
    out = jax.block_until_ready(out)

    ref = _reference(Q, K, V, heads)
    assert out.shape == (B, Q_len, dim)
    # approx (EUP) reciprocal in the softmax denominator -> ~1e-3 tolerance
    assert jnp.allclose(out, ref, atol=2e-3, rtol=2e-3)

    print("KERNEL_OK")
</pallas_src>

<mosaic_0001>
module attributes {stable_mosaic.version = 11 : i64} {
  func.func @_broad_mha_kernel(%arg0: i32, %arg1: memref<1x8x32xf32, #tpu.memory_space<vmem>>, %arg2: memref<1x16x32xf32, #tpu.memory_space<vmem>>, %arg3: memref<1x16x32xf32, #tpu.memory_space<vmem>>, %arg4: memref<1x8x32xf32, #tpu.memory_space<vmem>>) attributes {dimension_semantics = [#tpu.dimension_semantics<parallel>], iteration_bounds = array<i64: 2>, scalar_prefetch = 0 : i64, scratch_operands = 0 : i64, tpu.core_type = #tpu.core_type<tc>, window_params = [{pipeline_mode = #tpu.pipeline_mode<synchronous>, transform_indices = @transform_0, window_bounds = array<i64: 1, 8, 32>}, {transform_indices = @transform_1, window_bounds = array<i64: 1, 16, 32>}, {transform_indices = @transform_2, window_bounds = array<i64: 1, 16, 32>}, {transform_indices = @transform_3, window_bounds = array<i64: 1, 8, 32>}]} {
    %c0 = arith.constant 0 : index
    %c0_0 = arith.constant 0 : index
    %c0_1 = arith.constant 0 : index
    %0 = vector.load %arg1[%c0, %c0_0, %c0_1] : memref<1x8x32xf32, #tpu.memory_space<vmem>>, vector<1x8x32xf32>
    %1 = vector.shape_cast %0 : vector<1x8x32xf32> to vector<8x32xf32>
    %c0_2 = arith.constant 0 : index
    %c0_3 = arith.constant 0 : index
    %c0_4 = arith.constant 0 : index
    %2 = vector.load %arg2[%c0_2, %c0_3, %c0_4] : memref<1x16x32xf32, #tpu.memory_space<vmem>>, vector<1x16x32xf32>
    %3 = vector.shape_cast %2 : vector<1x16x32xf32> to vector<16x32xf32>
    %c0_5 = arith.constant 0 : index
    %c0_6 = arith.constant 0 : index
    %c0_7 = arith.constant 0 : index
    %4 = vector.load %arg3[%c0_5, %c0_6, %c0_7] : memref<1x16x32xf32, #tpu.memory_space<vmem>>, vector<1x16x32xf32>
    %5 = vector.shape_cast %4 : vector<1x16x32xf32> to vector<16x32xf32>
    %6 = vector.extract_strided_slice %1 {offsets = [0, 0], sizes = [8, 8], strides = [1, 1]} : vector<8x32xf32> to vector<8x8xf32>
    %cst = arith.constant 0.353553385 : f32
    %7 = vector.broadcast %cst : f32 to vector<8x8xf32>
    %8 = arith.mulf %6, %7 : vector<8x8xf32>
    %9 = vector.extract_strided_slice %3 {offsets = [0, 0], sizes = [16, 8], strides = [1, 1]} : vector<16x32xf32> to vector<16x8xf32>
    %10 = vector.extract_strided_slice %5 {offsets = [0, 0], sizes = [16, 8], strides = [1, 1]} : vector<16x32xf32> to vector<16x8xf32>
    %cst_8 = arith.constant dense<0.000000e+00> : vector<8x16xf32>
    %11 = tpu.matmul %8, %9, %cst_8 {dimension_numbers = #tpu.dot_dimension_numbers<[1], [1], [0], [0], [0, 0, 1, 0], [], []>} : vector<8x8xf32>, vector<16x8xf32>, vector<8x16xf32> -> vector<8x16xf32>
    %cst_9 = arith.constant dense<0xFF800000> : vector<8xf32>
    %12 = vector.multi_reduction <maximumf>, %11, %cst_9 [1] : vector<8x16xf32> to vector<8xf32>
    %13 = vector.shape_cast %12 : vector<8xf32> to vector<8x1xf32>
    %14 = vector.broadcast %13 : vector<8x1xf32> to vector<8x16xf32>
    %15 = arith.subf %11, %14 : vector<8x16xf32>
    %16 = math.exp %15 : vector<8x16xf32>
    %cst_10 = arith.constant dense<0.000000e+00> : vector<8xf32>
    %17 = vector.multi_reduction <add>, %16, %cst_10 [1] : vector<8x16xf32> to vector<8xf32>
    %18 = vector.shape_cast %17 : vector<8xf32> to vector<8x1xf32>
    %cst_11 = arith.constant dense<0.000000e+00> : vector<8x8xf32>
    %19 = tpu.matmul %16, %10, %cst_11 {dimension_numbers = #tpu.dot_dimension_numbers<[1], [0], [0], [1], [0, 0, 1, 1], [], []>} : vector<8x16xf32>, vector<16x8xf32>, vector<8x8xf32> -> vector<8x8xf32>
    %20 = tpu.reciprocal %18 {approx = true} : vector<8x1xf32> -> vector<8x1xf32>
    %21 = vector.broadcast %20 : vector<8x1xf32> to vector<8x8xf32>
    %22 = arith.mulf %19, %21 : vector<8x8xf32>
    %23 = vector.extract_strided_slice %1 {offsets = [0, 8], sizes = [8, 8], strides = [1, 1]} : vector<8x32xf32> to vector<8x8xf32>
    %cst_12 = arith.constant 0.353553385 : f32
    %24 = vector.broadcast %cst_12 : f32 to vector<8x8xf32>
    %25 = arith.mulf %23, %24 : vector<8x8xf32>
    %26 = vector.extract_strided_slice %3 {offsets = [0, 8], sizes = [16, 8], strides = [1, 1]} : vector<16x32xf32> to vector<16x8xf32>
    %27 = vector.extract_strided_slice %5 {offsets = [0, 8], sizes = [16, 8], strides = [1, 1]} : vector<16x32xf32> to vector<16x8xf32>
    %cst_13 = arith.constant dense<0.000000e+00> : vector<8x16xf32>
    %28 = tpu.matmul %25, %26, %cst_13 {dimension_numbers = #tpu.dot_dimension_numbers<[1], [1], [0], [0], [0, 0, 1, 0], [], []>} : vector<8x8xf32>, vector<16x8xf32>, vector<8x16xf32> -> vector<8x16xf32>
    %cst_14 = arith.constant dense<0xFF800000> : vector<8xf32>
    %29 = vector.multi_reduction <maximumf>, %28, %cst_14 [1] : vector<8x16xf32> to vector<8xf32>
    %30 = vector.shape_cast %29 : vector<8xf32> to vector<8x1xf32>
    %31 = vector.broadcast %30 : vector<8x1xf32> to vector<8x16xf32>
    %32 = arith.subf %28, %31 : vector<8x16xf32>
    %33 = math.exp %32 : vector<8x16xf32>
    %cst_15 = arith.constant dense<0.000000e+00> : vector<8xf32>
    %34 = vector.multi_reduction <add>, %33, %cst_15 [1] : vector<8x16xf32> to vector<8xf32>
    %35 = vector.shape_cast %34 : vector<8xf32> to vector<8x1xf32>
    %cst_16 = arith.constant dense<0.000000e+00> : vector<8x8xf32>
    %36 = tpu.matmul %33, %27, %cst_16 {dimension_numbers = #tpu.dot_dimension_numbers<[1], [0], [0], [1], [0, 0, 1, 1], [], []>} : vector<8x16xf32>, vector<16x8xf32>, vector<8x8xf32> -> vector<8x8xf32>
    %37 = tpu.reciprocal %35 {approx = true} : vector<8x1xf32> -> vector<8x1xf32>
    %38 = vector.broadcast %37 : vector<8x1xf32> to vector<8x8xf32>
    %39 = arith.mulf %36, %38 : vector<8x8xf32>
    %40 = vector.extract_strided_slice %1 {offsets = [0, 16], sizes = [8, 8], strides = [1, 1]} : vector<8x32xf32> to vector<8x8xf32>
    %cst_17 = arith.constant 0.353553385 : f32
    %41 = vector.broadcast %cst_17 : f32 to vector<8x8xf32>
    %42 = arith.mulf %40, %41 : vector<8x8xf32>
    %43 = vector.extract_strided_slice %3 {offsets = [0, 16], sizes = [16, 8], strides = [1, 1]} : vector<16x32xf32> to vector<16x8xf32>
    %44 = vector.extract_strided_slice %5 {offsets = [0, 16], sizes = [16, 8], strides = [1, 1]} : vector<16x32xf32> to vector<16x8xf32>
    %cst_18 = arith.constant dense<0.000000e+00> : vector<8x16xf32>
    %45 = tpu.matmul %42, %43, %cst_18 {dimension_numbers = #tpu.dot_dimension_numbers<[1], [1], [0], [0], [0, 0, 1, 0], [], []>} : vector<8x8xf32>, vector<16x8xf32>, vector<8x16xf32> -> vector<8x16xf32>
    %cst_19 = arith.constant dense<0xFF800000> : vector<8xf32>
    %46 = vector.multi_reduction <maximumf>, %45, %cst_19 [1] : vector<8x16xf32> to vector<8xf32>
    %47 = vector.shape_cast %46 : vector<8xf32> to vector<8x1xf32>
    %48 = vector.broadcast %47 : vector<8x1xf32> to vector<8x16xf32>
    %49 = arith.subf %45, %48 : vector<8x16xf32>
    %50 = math.exp %49 : vector<8x16xf32>
    %cst_20 = arith.constant dense<0.000000e+00> : vector<8xf32>
    %51 = vector.multi_reduction <add>, %50, %cst_20 [1] : vector<8x16xf32> to vector<8xf32>
    %52 = vector.shape_cast %51 : vector<8xf32> to vector<8x1xf32>
    %cst_21 = arith.constant dense<0.000000e+00> : vector<8x8xf32>
    %53 = tpu.matmul %50, %44, %cst_21 {dimension_numbers = #tpu.dot_dimension_numbers<[1], [0], [0], [1], [0, 0, 1, 1], [], []>} : vector<8x16xf32>, vector<16x8xf32>, vector<8x8xf32> -> vector<8x8xf32>
    %54 = tpu.reciprocal %52 {approx = true} : vector<8x1xf32> -> vector<8x1xf32>
    %55 = vector.broadcast %54 : vector<8x1xf32> to vector<8x8xf32>
    %56 = arith.mulf %53, %55 : vector<8x8xf32>
    %57 = vector.extract_strided_slice %1 {offsets = [0, 24], sizes = [8, 8], strides = [1, 1]} : vector<8x32xf32> to vector<8x8xf32>
    %cst_22 = arith.constant 0.353553385 : f32
    %58 = vector.broadcast %cst_22 : f32 to vector<8x8xf32>
    %59 = arith.mulf %57, %58 : vector<8x8xf32>
    %60 = vector.extract_strided_slice %3 {offsets = [0, 24], sizes = [16, 8], strides = [1, 1]} : vector<16x32xf32> to vector<16x8xf32>
    %61 = vector.extract_strided_slice %5 {offsets = [0, 24], sizes = [16, 8], strides = [1, 1]} : vector<16x32xf32> to vector<16x8xf32>
    %cst_23 = arith.constant dense<0.000000e+00> : vector<8x16xf32>
    %62 = tpu.matmul %59, %60, %cst_23 {dimension_numbers = #tpu.dot_dimension_numbers<[1], [1], [0], [0], [0, 0, 1, 0], [], []>} : vector<8x8xf32>, vector<16x8xf32>, vector<8x16xf32> -> vector<8x16xf32>
    %cst_24 = arith.constant dense<0xFF800000> : vector<8xf32>
    %63 = vector.multi_reduction <maximumf>, %62, %cst_24 [1] : vector<8x16xf32> to vector<8xf32>
    %64 = vector.shape_cast %63 : vector<8xf32> to vector<8x1xf32>
    %65 = vector.broadcast %64 : vector<8x1xf32> to vector<8x16xf32>
    %66 = arith.subf %62, %65 : vector<8x16xf32>
    %67 = math.exp %66 : vector<8x16xf32>
    %cst_25 = arith.constant dense<0.000000e+00> : vector<8xf32>
    %68 = vector.multi_reduction <add>, %67, %cst_25 [1] : vector<8x16xf32> to vector<8xf32>
    %69 = vector.shape_cast %68 : vector<8xf32> to vector<8x1xf32>
    %cst_26 = arith.constant dense<0.000000e+00> : vector<8x8xf32>
    %70 = tpu.matmul %67, %61, %cst_26 {dimension_numbers = #tpu.dot_dimension_numbers<[1], [0], [0], [1], [0, 0, 1, 1], [], []>} : vector<8x16xf32>, vector<16x8xf32>, vector<8x8xf32> -> vector<8x8xf32>
    %71 = tpu.reciprocal %69 {approx = true} : vector<8x1xf32> -> vector<8x1xf32>
    %72 = vector.broadcast %71 : vector<8x1xf32> to vector<8x8xf32>
    %73 = arith.mulf %70, %72 : vector<8x8xf32>
    %74 = tpu.concatenate %22, %39, %56, %73 in 1 : vector<8x8xf32>, vector<8x8xf32>, vector<8x8xf32>, vector<8x8xf32> -> vector<8x32xf32>
    %c0_27 = arith.constant 0 : index
    %c0_28 = arith.constant 0 : index
    %c0_29 = arith.constant 0 : index
    %75 = vector.load %arg4[%c0_27, %c0_28, %c0_29] : memref<1x8x32xf32, #tpu.memory_space<vmem>>, vector<1x8x32xf32>
    %76 = vector.shape_cast %75 : vector<1x8x32xf32> to vector<8x32xf32>
    %77 = vector.shape_cast %74 : vector<8x32xf32> to vector<1x8x32xf32>
    tpu.vector_store %arg4[%c0_27, %c0_28, %c0_29], %77 {strides = array<i32>} : memref<1x8x32xf32, #tpu.memory_space<vmem>>, vector<1x8x32xf32>,
    return
  }
  func.func @transform_0(%arg0: i32) -> (i32, i32, i32) {
    %c0_i32 = arith.constant 0 : i32
    %c0_i32_0 = arith.constant 0 : i32
    %c0_i32_1 = arith.constant 0 : i32
    %c0_i32_2 = arith.constant 0 : i32
    return %c0_i32, %c0_i32_0, %c0_i32_1 : i32, i32, i32
  }
  func.func @transform_1(%arg0: i32) -> (i32, i32, i32) {
    %c0_i32 = arith.constant 0 : i32
    %c0_i32_0 = arith.constant 0 : i32
    %c0_i32_1 = arith.constant 0 : i32
    return %arg0, %c0_i32, %c0_i32_0 : i32, i32, i32
  }
  func.func @transform_2(%arg0: i32) -> (i32, i32, i32) {
    %c0_i32 = arith.constant 0 : i32
    %c0_i32_0 = arith.constant 0 : i32
    %c0_i32_1 = arith.constant 0 : i32
    return %arg0, %c0_i32, %c0_i32_0 : i32, i32, i32
  }
  func.func @transform_3(%arg0: i32) -> (i32, i32, i32) {
    %c0_i32 = arith.constant 0 : i32
    %c0_i32_0 = arith.constant 0 : i32
    %c0_i32_1 = arith.constant 0 : i32
    return %arg0, %c0_i32, %c0_i32_0 : i32, i32, i32
  }
}

</mosaic_0001>

<llo_original>
// kernel: tpu_custom_call.1
$region0: #{tpu_custom_call.1}
  #allocation0 [shape = 'u32[]', space=smem, size = 0x4, offset = 0x4, fixed_abs, tag = 'smem constant byte address 0x4 - core index']
  #allocation1 [shape = 'u32[144,128]{1,0:T(1,128)}', space=vmem, size = 0x12000, scoped, tag = 'internal scratch']
  %s0 = inlined_call_operand.hbm [shape: f32[1,8,32], index: 0, kind: input, shape index: {}]
  %s1 = inlined_call_operand.hbm [shape: f32[2,16,32], index: 1, kind: input, shape index: {}]
  %s2 = inlined_call_operand.hbm [shape: f32[2,16,32], index: 2, kind: input, shape index: {}]
  %s3 = inlined_call_operand.hbm [shape: f32[2,8,32], index: 3, kind: output, shape index: {}]
  %s4 = sld [smem:[#allocation0]]
  $region57: #{tpu_custom_call.1} parent=0
    _
  %s6 = ssub.s32 1, %s4
  %s7 = scalar_select 0, %s6, %s4
  $region1: #{tpu_custom_call.1} parent=0
    #allocation2 [shape = 'u8[4096]{0}', space=vmem, size = 0x1000, scoped, tag = 'input window, operand 0, single buffered']
    #allocation3 [shape = 's32[2]{0}', space=sflag, size = 0x8, scoped, tag = 'scoped memory for tpu_custom_call.1']
    #allocation4 [shape = 's32[2]{0}', space=sflag, size = 0x8, scoped, tag = 'scoped memory for tpu_custom_call.1']
    #allocation5 [shape = 'u8[16384]{0}', space=vmem, size = 0x4000, scoped, tag = 'input window, operand 1']
    #allocation6 [shape = 's32[2]{0}', space=sflag, size = 0x8, scoped, tag = 'scoped memory for tpu_custom_call.1']
    #allocation7 [shape = 'u8[16384]{0}', space=vmem, size = 0x4000, scoped, tag = 'input window, operand 2']
    #allocation8 [shape = 'u8[8192]{0}', space=vmem, size = 0x2000, scoped, tag = 'output window, operand 0']
    %8 = vsyncpa [#allocation3], 0
    %9 = vsyncpa [#allocation6], 0
    %s10 = scalar_lea.sflag [#allocation6], 1
    %11 = vsyncpa %s10, 0
    %12 = vsyncpa [#allocation4], 0
    %s13 = scalar_lea.sflag [#allocation4], 1
    %14 = vsyncpa %s13, 0
    loop: start=0, step=1, limit=4
    $region2: #{tpu_custom_call.1} parent=1 // loop_pre_header
      _
    $region3: #{tpu_custom_call.1} parent=1 // loop_header
      %s16 = sphi 0, %s20
      %p17 = scmp.ge.s32.totalorder %s16, 4
      %s24 = sphi 0, %s24
      %s26 = sphi 0, %s24
      %s27 = sphi 0, %s26
      %s41 = sphi 0, %s27
      %s47 = sphi 0, %s49
      %s50 = sphi 0, %s47
      %s51 = sphi 0, %s50
      %s67 = sphi 0, %s51
      %s73 = sphi 0, %s75
      %s76 = sphi 0, %s73
      %s77 = sphi 0, %s76
      %s93 = sphi 0, %s77
      %s99 = sphi 0, %s101
      %s102 = sphi 0, %s99
      %s103 = sphi 0, %s102
      %s119 = sphi 0, %s103
    $region4: #{tpu_custom_call.1} parent=1 // loop_header_branch
      %19 = sbr.rel (%p17) target = $region8
    $region5: #{tpu_custom_call.1} parent=1 // loop_body
      %s21 = ssub.s32 %s16, 1
      %s22 = ssub.s32 %s16, 2
      %s23 = sadd.s32 %s16, 1
      %s25 = sadd.s32 %s24, 1
      %p28 = scmp.eq.s32.totalorder %s16, 1
      %p29 = scmp.ne.s32.totalorder %s24, %s26
      %p30 = scmp.eq.s32.totalorder %s16, 0
      %p31 = por %p29, %p30
      %p32 = scmp.ne.s32.totalorder %s24, %s26
      %p33 = scmp.eq.s32.totalorder %s21, 1
      %p34 = por %p32, %p33
      %p35 = scmp.ne.s32.totalorder %s26, %s27
      %p36 = scmp.eq.s32.totalorder %s21, 0
      %p37 = por %p35, %p36
      %p38 = scmp.ne.s32.totalorder %s26, %s27
      %p39 = scmp.eq.s32.totalorder %s22, 1
      %p40 = por %p38, %p39
      %p42 = scmp.ne.s32.totalorder %s27, %s41
      %p43 = scmp.eq.s32.totalorder %s22, 0
      %p44 = por %p42, %p43
      %s45 = ssub.s32 %s16, %s23
      %p46 = scmp.eq.s32.totalorder %s45, 0
      %s48 = sadd.s32 %s47, 1
      %s49 = scalar_select %p46, %s47, %s48
      %p52 = pneg %p46
      %p53 = scmp.eq.s32.totalorder %s16, 1
      %p54 = por %p52, %p53
      %p55 = scmp.ne.s32.totalorder %s47, %s50
      %p56 = scmp.eq.s32.totalorder %s16, 0
      %p57 = por %p55, %p56
      %p58 = scmp.ne.s32.totalorder %s47, %s50
      %p59 = scmp.eq.s32.totalorder %s21, 1
      %p60 = por %p58, %p59
      %p61 = scmp.ne.s32.totalorder %s50, %s51
      %p62 = scmp.eq.s32.totalorder %s21, 0
      %p63 = por %p61, %p62
      %p64 = scmp.ne.s32.totalorder %s50, %s51
      %p65 = scmp.eq.s32.totalorder %s22, 1
      %p66 = por %p64, %p65
      %p68 = scmp.ne.s32.totalorder %s51, %s67
      %p69 = scmp.eq.s32.totalorder %s22, 0
      %p70 = por %p68, %p69
      %s71 = ssub.s32 %s16, %s23
      %p72 = scmp.eq.s32.totalorder %s71, 0
      %s74 = sadd.s32 %s73, 1
      %s75 = scalar_select %p72, %s73, %s74
      %p78 = pneg %p72
      %p79 = scmp.eq.s32.totalorder %s16, 1
      %p80 = por %p78, %p79
      %p81 = scmp.ne.s32.totalorder %s73, %s76
      %p82 = scmp.eq.s32.totalorder %s16, 0
      %p83 = por %p81, %p82
      %p84 = scmp.ne.s32.totalorder %s73, %s76
      %p85 = scmp.eq.s32.totalorder %s21, 1
      %p86 = por %p84, %p85
      %p87 = scmp.ne.s32.totalorder %s76, %s77
      %p88 = scmp.eq.s32.totalorder %s21, 0
      %p89 = por %p87, %p88
      %p90 = scmp.ne.s32.totalorder %s76, %s77
      %p91 = scmp.eq.s32.totalorder %s22, 1
      %p92 = por %p90, %p91
      %p94 = scmp.ne.s32.totalorder %s77, %s93
      %p95 = scmp.eq.s32.totalorder %s22, 0
      %p96 = por %p94, %p95
      %s97 = ssub.s32 %s16, %s23
      %p98 = scmp.eq.s32.totalorder %s97, 0
      %s100 = sadd.s32 %s99, 1
      %s101 = scalar_select %p98, %s99, %s100
      %p104 = pneg %p98
      %p105 = scmp.eq.s32.totalorder %s16, 1
      %p106 = por %p104, %p105
      %p107 = scmp.ne.s32.totalorder %s99, %s102
      %p108 = scmp.eq.s32.totalorder %s16, 0
      %p109 = por %p107, %p108
      %p110 = scmp.ne.s32.totalorder %s99, %s102
      %p111 = scmp.eq.s32.totalorder %s21, 1
      %p112 = por %p110, %p111
      %p113 = scmp.ne.s32.totalorder %s102, %s103
      %p114 = scmp.eq.s32.totalorder %s21, 0
      %p115 = por %p113, %p114
      %p116 = scmp.ne.s32.totalorder %s102, %s103
      %p117 = scmp.eq.s32.totalorder %s22, 1
      %p118 = por %p116, %p117
      %p120 = scmp.ne.s32.totalorder %s103, %s119
      %p121 = scmp.eq.s32.totalorder %s22, 0
      %p122 = por %p120, %p121
      %p123 = scmp.le.s32.totalorder 1, %s16
      %p124 = scmp.lt.s32.totalorder %s16, 3
      %p125 = pnand %p123, %p124
      %p126 = pneg %p125
      // Predicated region
      $region9: #{tpu_custom_call.1} parent=5 // pred_check
        _
      $region10: #{tpu_custom_call.1} parent=5 // pred_check_branch
        %128 = sbr.rel (%p125) target = $region12
      $region11: #{tpu_custom_call.1} parent=5 // pred_region
        %s129 = ssub.s32 %s16, 1
        // Predicated region
        $region13: #{tpu_custom_call.1} parent=11 // pred_check
          %p130 = pneg %p37
        $region14: #{tpu_custom_call.1} parent=11 // pred_check_branch
          %132 = sbr.rel (%p130) target = $region16
        $region15: #{tpu_custom_call.1} parent=11 // pred_region
          %s134 = ssub.s32 128, 128
          %135 = vsyncadd [#allocation3], %s134
          %s137 = sshll.u32 [#allocation2], 4
          %s138 = int_to_ptr.vmem [resolvable:$true] %s137
          %140 = dma.hbm_to_vmem [thread:$0]  %s0, 128, %s138, [#allocation3]
        $region16: #{tpu_custom_call.1} parent=11 // pred_fallthru
          _
      $region12: #{tpu_custom_call.1} parent=5 // pred_fallthru
        _
      %p141 = scmp.lt.s32.totalorder %s16, 2
      // Predicated region
      $region17: #{tpu_custom_call.1} parent=5 // pred_check
        %p142 = pneg %p141
      $region18: #{tpu_custom_call.1} parent=5 // pred_check_branch
        %144 = sbr.rel (%p142) target = $region20
      $region19: #{tpu_custom_call.1} parent=5 // pred_region
        // Predicated region
        $region21: #{tpu_custom_call.1} parent=19 // pred_check
          %p145 = pneg %p57
        $region22: #{tpu_custom_call.1} parent=19 // pred_check_branch
          %147 = sbr.rel (%p145) target = $region24
        $region23: #{tpu_custom_call.1} parent=19 // pred_region
          %s148 = sand.u32 %s16, 1
          %s149 = scalar_lea.sflag [#allocation6], %s148
          %s150 = sand.u32 %s47, 1
          %s151 = smul.addr %s150, 16
          %s152 = scalar_lea.vmem [#allocation5], %s151
          %s154 = ssub.s32 256, 256
          %155 = vsyncadd %s149, %s154
          %s156 = smul.addr %s16, 2
          %s157 = smul.addr %s156, 128
          %s158 = scalar_lea.hbm %s1, %s157
          %s159 = sshll.u32 %s152, 4
          %s160 = int_to_ptr.vmem [resolvable:$true] %s159
          %165 = dma.hbm_to_vmem [thread:$0]  %s158, 256, %s160, %s149, 128, 128, 8
        $region24: #{tpu_custom_call.1} parent=19 // pred_fallthru
          _
        // Predicated region
        $region25: #{tpu_custom_call.1} parent=19 // pred_check
          %p166 = pneg %p83
        $region26: #{tpu_custom_call.1} parent=19 // pred_check_branch
          %168 = sbr.rel (%p166) target = $region28
        $region27: #{tpu_custom_call.1} parent=19 // pred_region
          %s169 = sand.u32 %s16, 1
          %s170 = scalar_lea.sflag [#allocation6], %s169
          %s171 = sand.u32 %s73, 1
          %s172 = smul.addr %s171, 16
          %s173 = scalar_lea.vmem [#allocation7], %s172
          %s175 = ssub.s32 256, 256
          %176 = vsyncadd %s170, %s175
          %s177 = smul.addr %s16, 2
          %s178 = smul.addr %s177, 128
          %s179 = scalar_lea.hbm %s2, %s178
          %s180 = sshll.u32 %s173, 4
          %s181 = int_to_ptr.vmem [resolvable:$true] %s180
          %186 = dma.hbm_to_vmem [thread:$0]  %s179, 256, %s181, %s170, 128, 128, 8
        $region28: #{tpu_custom_call.1} parent=19 // pred_fallthru
          _
      $region20: #{tpu_custom_call.1} parent=5 // pred_fallthru
        _
      %p187 = scmp.le.s32.totalorder 1, %s16
      %p188 = scmp.lt.s32.totalorder %s16, 3
      %p189 = pnand %p187, %p188
      %p190 = pneg %p189
      // Predicated region
      $region29: #{tpu_custom_call.1} parent=5 // pred_check
        _
      $region30: #{tpu_custom_call.1} parent=5 // pred_check_branch
        %192 = sbr.rel (%p189) target = $region32
      $region31: #{tpu_custom_call.1} parent=5 // pred_region
        %s193 = ssub.s32 %s16, 1
        // Predicated region
        $region33: #{tpu_custom_call.1} parent=31 // pred_check
          %p194 = pneg %p37
        $region34: #{tpu_custom_call.1} parent=31 // pred_check_branch
          %196 = sbr.rel (%p194) target = $region36
        $region35: #{tpu_custom_call.1} parent=31 // pred_region
          %197 = dma.done [#allocation3], 128
        $region36: #{tpu_custom_call.1} parent=31 // pred_fallthru
          _
        %s198 = sand.u32 %s21, 1
        %s199 = scalar_lea.sflag [#allocation6], %s198
        %s200 = sand.u32 %s50, 1
        %s201 = smul.addr %s200, 16
        %s202 = scalar_lea.vmem [#allocation5], %s201
        // Predicated region
        $region37: #{tpu_custom_call.1} parent=31 // pred_check
          %p203 = pneg %p63
        $region38: #{tpu_custom_call.1} parent=31 // pred_check_branch
          %205 = sbr.rel (%p203) target = $region40
        $region39: #{tpu_custom_call.1} parent=31 // pred_region
          %206 = dma.done %s199, 256
        $region40: #{tpu_custom_call.1} parent=31 // pred_fallthru
          _
        %s207 = sand.u32 %s21, 1
        %s208 = scalar_lea.sflag [#allocation6], %s207
        %s209 = sand.u32 %s76, 1
        %s210 = smul.addr %s209, 16
        %s211 = scalar_lea.vmem [#allocation7], %s210
        // Predicated region
        $region41: #{tpu_custom_call.1} parent=31 // pred_check
          %p212 = pneg %p89
        $region42: #{tpu_custom_call.1} parent=31 // pred_check_branch
          %214 = sbr.rel (%p212) target = $region44
        $region43: #{tpu_custom_call.1} parent=31 // pred_region
          %215 = dma.done %s208, 256
        $region44: #{tpu_custom_call.1} parent=31 // pred_fallthru
          _
        %p216 = pneg %p37
        %p217 = pneg %p34
        %s218 = sand.u32 %s21, 1
        %s219 = scalar_lea.sflag [#allocation6], %s218
        %s220 = sand.u32 %s50, 1
        %s221 = smul.addr %s220, 16
        %s222 = scalar_lea.vmem [#allocation5], %s221
        %p223 = pneg %p63
        %p224 = pneg %p60
        %s225 = sand.u32 %s21, 1
        %s226 = scalar_lea.sflag [#allocation6], %s225
        %s227 = sand.u32 %s76, 1
        %s228 = smul.addr %s227, 16
        %s229 = scalar_lea.vmem [#allocation7], %s228
        %p230 = pneg %p89
        %p231 = pneg %p86
        %p232 = pneg %p115
        %p233 = pneg %p112
        %s234 = sand.u32 %s102, 1
        %s235 = scalar_lea.sflag [#allocation4], %s234
        %s236 = sand.u32 %s102, 1
        %s237 = smul.addr %s236, 8
        %s238 = scalar_lea.vmem [#allocation8], %s237
        %v239 = vld [vmem:[#allocation2] sm:$0xff]
        %v240 = vld [vmem:[%s202] sm:$0xff]
        %v241 = vld [vmem:[%s202 + $0x8] sm:$0xff]
        %v242 = vld [vmem:[%s211] sm:$0xff]
        %v243 = vld [vmem:[%s211 + $0x8] sm:$0xff]
        %v244 = vmul.f32 %v239, 0.35355338
        %vm245 = vcmask 64512
        %v247 = vsel %vm245, %v244, 0
        %v250 = vsel %vm245, %v240, 0
        %v253 = vsel %vm245, %v241, 0
        %255 = vmatprep.subr.mxu0 0.0
        %256 = vmatpush1.xpose.msra.mxu0 0.0
        %257 = vmatprep.subr.mxu0 0.0
        %258 = vmatpush1.xpose.msra.mxu0 0.0
        %259 = vmatprep.subr.mxu0 0.0
        %260 = vmatpush1.xpose.msra.mxu0 0.0
        %261 = vmatprep.subr.mxu0 0.0
        %262 = vmatpush1.xpose.msra.mxu0 0.0
        %263 = vmatprep.subr.mxu0 0.0
        %264 = vmatpush1.xpose.msra.mxu0 0.0
        %265 = vmatprep.subr.mxu0 0.0
        %266 = vmatpush1.xpose.msra.mxu0 0.0
        %267 = vmatprep.subr.mxu0 0.0
        %268 = vmatpush1.xpose.msra.mxu0 0.0
        %269 = vmatprep.subr.mxu0 0.0
        %270 = vmatpush1.xpose.msra.mxu0 0.0
        %271 = vmatprep.subr.mxu0 0.0
        %272 = vmatpush1.xpose.msra.mxu0 0.0
        %273 = vmatprep.subr.mxu0 0.0
        %274 = vmatpush1.xpose.msra.mxu0 0.0
        %275 = vmatprep.subr.mxu0 0.0
        %276 = vmatpush1.xpose.msra.mxu0 0.0
        %277 = vmatprep.subr.mxu0 0.0
        %278 = vmatpush1.xpose.msra.mxu0 0.0
        %279 = vmatprep.subr.mxu0 0.0
        %280 = vmatpush1.xpose.msra.mxu0 0.0
        %281 = vmatprep.subr.mxu0 0.0
        %282 = vmatpush1.xpose.msra.mxu0 0.0
        %283 = vmatprep.subr.mxu0 0.0
        %284 = vmatpush1.xpose.msra.mxu0 %v253
        %285 = vmatprep.subr.mxu0 0.0
        %286 = vmatpush1.xpose.msra.mxu0 %v250
        %287 = vmatprep.subr.mxu0 0.0
        %288 = vmatpush2.xpose.msra.mxu0 0.0
        %289 = vmatprep.subr.mxu0 0.0
        %290 = vmatpush2.xpose.msra.mxu0 0.0
        %291 = vmatprep.subr.mxu0 0.0
        %292 = vmatpush2.xpose.msra.mxu0 0.0
        %293 = vmatprep.subr.mxu0 0.0
        %294 = vmatpush2.xpose.msra.mxu0 0.0
        %295 = vmatprep.subr.mxu0 0.0
        %296 = vmatpush2.xpose.msra.mxu0 0.0
        %297 = vmatprep.subr.mxu0 0.0
        %298 = vmatpush2.xpose.msra.mxu0 0.0
        %299 = vmatprep.subr.mxu0 0.0
        %300 = vmatpush2.xpose.msra.mxu0 0.0
        %301 = vmatprep.subr.mxu0 0.0
        %302 = vmatpush2.xpose.msra.mxu0 0.0
        %303 = vmatprep.subr.mxu0 0.0
        %304 = vmatpush2.xpose.msra.mxu0 0.0
        %305 = vmatprep.subr.mxu0 0.0
        %306 = vmatpush2.xpose.msra.mxu0 0.0
        %307 = vmatprep.subr.mxu0 0.0
        %308 = vmatpush2.xpose.msra.mxu0 0.0
        %309 = vmatprep.subr.mxu0 0.0
        %310 = vmatpush2.xpose.msra.mxu0 0.0
        %311 = vmatprep.subr.mxu0 0.0
        %312 = vmatpush2.xpose.msra.mxu0 0.0
        %313 = vmatprep.subr.mxu0 0.0
        %314 = vmatpush2.xpose.msra.mxu0 0.0
        %315 = vmatprep.subr.mxu0 0.0
        %316 = vmatpush2.xpose.msra.mxu0 0.0
        %317 = vmatprep.subr.mxu0 0.0
        %318 = vmatpush2.xpose.msra.mxu0 0.0
        %319 = vmatprep.mubr.f32.mxu0 0.0
        %320 = vmatmul.mubr.f32.gmra.mxu0 %v247
        %v321 = vpop.f32.mrf.mxu0
        %v322 = vadd.f32 0.0, %v321
        %v323 = vpop.f32.mrf.mxu0
        %324 = vdwg.mxu0
        %vm325 = vcmask 130048
        %v326 = vsel %vm325, %v322, -inf
        %327 = vmax.xlane.f32.xlu0 %v326
        %v328 = vpop.xlane.xlu0 %327
        %v329 = vsub.f32 %v322, %v328
        %v330 = vmul.f32 %v329, 1.442695
        %v331 = vpow.pop %v330
        %v332 = vsel %vm325, %v331, 0.0
        %333 = vadd.xlane.f32.xlu0 %v332
        %v334 = vpop.xlane.xlu0 %333
        %v336 = vsel %vm325, %v331, 0
        %338 = vmatprep.subr.mxu0 0.0
        %339 = vmatpush1.msra.mxu0 0.0
        %340 = vmatprep.subr.mxu0 0.0
        %341 = vmatpush1.msra.mxu0 0.0
        %342 = vmatprep.subr.mxu0 0.0
        %343 = vmatpush1.msra.mxu0 0.0
        %344 = vmatprep.subr.mxu0 0.0
        %345 = vmatpush1.msra.mxu0 0.0
        %346 = vmatprep.subr.mxu0 0.0
        %347 = vmatpush1.msra.mxu0 0.0
        %348 = vmatprep.subr.mxu0 0.0
        %349 = vmatpush1.msra.mxu0 0.0
        %350 = vmatprep.subr.mxu0 0.0
        %351 = vmatpush1.msra.mxu0 0.0
        %352 = vmatprep.subr.mxu0 0.0
        %353 = vmatpush1.msra.mxu0 0.0
        %354 = vmatprep.subr.mxu0 0.0
        %355 = vmatpush1.msra.mxu0 0.0
        %356 = vmatprep.subr.mxu0 0.0
        %357 = vmatpush1.msra.mxu0 0.0
        %358 = vmatprep.subr.mxu0 0.0
        %359 = vmatpush1.msra.mxu0 0.0
        %360 = vmatprep.subr.mxu0 0.0
        %361 = vmatpush1.msra.mxu0 0.0
        %362 = vmatprep.subr.mxu0 0.0
        %363 = vmatpush1.msra.mxu0 0.0
        %364 = vmatprep.subr.mxu0 0.0
        %365 = vmatpush1.msra.mxu0 0.0
        %366 = vmatprep.subr.mxu0 0.0
        %367 = vmatpush1.msra.mxu0 %v243
        %368 = vmatprep.subr.mxu0 0.0
        %369 = vmatpush1.msra.mxu0 %v242
        %370 = vmatprep.subr.mxu0 0.0
        %371 = vmatpush2.msra.mxu0 0.0
        %372 = vmatprep.subr.mxu0 0.0
        %373 = vmatpush2.msra.mxu0 0.0
        %374 = vmatprep.subr.mxu0 0.0
        %375 = vmatpush2.msra.mxu0 0.0
        %376 = vmatprep.subr.mxu0 0.0
        %377 = vmatpush2.msra.mxu0 0.0
        %378 = vmatprep.subr.mxu0 0.0
        %379 = vmatpush2.msra.mxu0 0.0
        %380 = vmatprep.subr.mxu0 0.0
        %381 = vmatpush2.msra.mxu0 0.0
        %382 = vmatprep.subr.mxu0 0.0
        %383 = vmatpush2.msra.mxu0 0.0
        %384 = vmatprep.subr.mxu0 0.0
        %385 = vmatpush2.msra.mxu0 0.0
        %386 = vmatprep.subr.mxu0 0.0
        %387 = vmatpush2.msra.mxu0 0.0
        %388 = vmatprep.subr.mxu0 0.0
        %389 = vmatpush2.msra.mxu0 0.0
        %390 = vmatprep.subr.mxu0 0.0
        %391 = vmatpush2.msra.mxu0 0.0
        %392 = vmatprep.subr.mxu0 0.0
        %393 = vmatpush2.msra.mxu0 0.0
        %394 = vmatprep.subr.mxu0 0.0
        %395 = vmatpush2.msra.mxu0 0.0
        %396 = vmatprep.subr.mxu0 0.0
        %397 = vmatpush2.msra.mxu0 0.0
        %398 = vmatprep.subr.mxu0 0.0
        %399 = vmatpush2.msra.mxu0 0.0
        %400 = vmatprep.subr.mxu0 0.0
        %401 = vmatpush2.msra.mxu0 0.0
        %402 = vmatprep.mubr.f32.mxu0 0.0
        %403 = vmatmul.mubr.f32.gmra.mxu0 %v336
        %v404 = vpop.f32.mrf.mxu0
        %v405 = vadd.f32 0.0, %v404
        %v406 = vpop.f32.mrf.mxu0
        %407 = vdwg.mxu0
        %v408 = vrcp.pop %v334
        %v409 = vmul.f32 %v405, %v408
        %410 = vrot.lane.b32.xlu0 %v244, 120
        %v411 = vpop.permute.xlu0 %410
        %412 = vrot.lane.b32.xlu0 %v240, 120
        %v413 = vpop.permute.xlu0 %412
        %414 = vrot.lane.b32.xlu0 %v241, 120
        %v415 = vpop.permute.xlu0 %414
        %v416 = vsel %vm245, %v411, 0
        %v418 = vsel %vm245, %v413, 0
        %v420 = vsel %vm245, %v415, 0
        %422 = vmatprep.subr.mxu0 0.0
        %423 = vmatpush1.xpose.msra.mxu0 0.0
        %424 = vmatprep.subr.mxu0 0.0
        %425 = vmatpush1.xpose.msra.mxu0 0.0
        %426 = vmatprep.subr.mxu0 0.0
        %427 = vmatpush1.xpose.msra.mxu0 0.0
        %428 = vmatprep.subr.mxu0 0.0
        %429 = vmatpush1.xpose.msra.mxu0 0.0
        %430 = vmatprep.subr.mxu0 0.0
        %431 = vmatpush1.xpose.msra.mxu0 0.0
        %432 = vmatprep.subr.mxu0 0.0
        %433 = vmatpush1.xpose.msra.mxu0 0.0
        %434 = vmatprep.subr.mxu0 0.0
        %435 = vmatpush1.xpose.msra.mxu0 0.0
        %436 = vmatprep.subr.mxu0 0.0
        %437 = vmatpush1.xpose.msra.mxu0 0.0
        %438 = vmatprep.subr.mxu0 0.0
        %439 = vmatpush1.xpose.msra.mxu0 0.0
        %440 = vmatprep.subr.mxu0 0.0
        %441 = vmatpush1.xpose.msra.mxu0 0.0
        %442 = vmatprep.subr.mxu0 0.0
        %443 = vmatpush1.xpose.msra.mxu0 0.0
        %444 = vmatprep.subr.mxu0 0.0
        %445 = vmatpush1.xpose.msra.mxu0 0.0
        %446 = vmatprep.subr.mxu0 0.0
        %447 = vmatpush1.xpose.msra.mxu0 0.0
        %448 = vmatprep.subr.mxu0 0.0
        %449 = vmatpush1.xpose.msra.mxu0 0.0
        %450 = vmatprep.subr.mxu0 0.0
        %451 = vmatpush1.xpose.msra.mxu0 %v420
        %452 = vmatprep.subr.mxu0 0.0
        %453 = vmatpush1.xpose.msra.mxu0 %v418
        %454 = vmatprep.subr.mxu0 0.0
        %455 = vmatpush2.xpose.msra.mxu0 0.0
        %456 = vmatprep.subr.mxu0 0.0
        %457 = vmatpush2.xpose.msra.mxu0 0.0
        %458 = vmatprep.subr.mxu0 0.0
        %459 = vmatpush2.xpose.msra.mxu0 0.0
        %460 = vmatprep.subr.mxu0 0.0
        %461 = vmatpush2.xpose.msra.mxu0 0.0
        %462 = vmatprep.subr.mxu0 0.0
        %463 = vmatpush2.xpose.msra.mxu0 0.0
        %464 = vmatprep.subr.mxu0 0.0
        %465 = vmatpush2.xpose.msra.mxu0 0.0
        %466 = vmatprep.subr.mxu0 0.0
        %467 = vmatpush2.xpose.msra.mxu0 0.0
        %468 = vmatprep.subr.mxu0 0.0
        %469 = vmatpush2.xpose.msra.mxu0 0.0
        %470 = vmatprep.subr.mxu0 0.0
        %471 = vmatpush2.xpose.msra.mxu0 0.0
        %472 = vmatprep.subr.mxu0 0.0
        %473 = vmatpush2.xpose.msra.mxu0 0.0
        %474 = vmatprep.subr.mxu0 0.0
        %475 = vmatpush2.xpose.msra.mxu0 0.0
        %476 = vmatprep.subr.mxu0 0.0
        %477 = vmatpush2.xpose.msra.mxu0 0.0
        %478 = vmatprep.subr.mxu0 0.0
        %479 = vmatpush2.xpose.msra.mxu0 0.0
        %480 = vmatprep.subr.mxu0 0.0
        %481 = vmatpush2.xpose.msra.mxu0 0.0
        %482 = vmatprep.subr.mxu0 0.0
        %483 = vmatpush2.xpose.msra.mxu0 0.0
        %484 = vmatprep.subr.mxu0 0.0
        %485 = vmatpush2.xpose.msra.mxu0 0.0
        %486 = vmatprep.mubr.f32.mxu0 0.0
        %487 = vmatmul.mubr.f32.gmra.mxu0 %v416
        %v488 = vpop.f32.mrf.mxu0
        %v489 = vadd.f32 0.0, %v488
        %v490 = vpop.f32.mrf.mxu0
        %491 = vdwg.mxu0
        %v492 = vsel %vm325, %v489, -inf
        %493 = vmax.xlane.f32.xlu0 %v492
        %v494 = vpop.xlane.xlu0 %493
        %v495 = vsub.f32 %v489, %v494
        %v496 = vmul.f32 %v495, 1.442695
        %v497 = vpow.pop %v496
        %v498 = vsel %vm325, %v497, 0.0
        %499 = vadd.xlane.f32.xlu0 %v498
        %v500 = vpop.xlane.xlu0 %499
        %503 = vrot.lane.b32.xlu0 %v242, 120
        %v504 = vpop.permute.xlu0 %503
        %505 = vrot.lane.b32.xlu0 %v243, 120
        %v506 = vpop.permute.xlu0 %505
        %v510 = vsel %vm325, %v497, 0
        %512 = vmatprep.subr.mxu0 0.0
        %513 = vmatpush1.msra.mxu0 0.0
        %514 = vmatprep.subr.mxu0 0.0
        %515 = vmatpush1.msra.mxu0 0.0
        %516 = vmatprep.subr.mxu0 0.0
        %517 = vmatpush1.msra.mxu0 0.0
        %518 = vmatprep.subr.mxu0 0.0
        %519 = vmatpush1.msra.mxu0 0.0
        %520 = vmatprep.subr.mxu0 0.0
        %521 = vmatpush1.msra.mxu0 0.0
        %522 = vmatprep.subr.mxu0 0.0
        %523 = vmatpush1.msra.mxu0 0.0
        %524 = vmatprep.subr.mxu0 0.0
        %525 = vmatpush1.msra.mxu0 0.0
        %526 = vmatprep.subr.mxu0 0.0
        %527 = vmatpush1.msra.mxu0 0.0
        %528 = vmatprep.subr.mxu0 0.0
        %529 = vmatpush1.msra.mxu0 0.0
        %530 = vmatprep.subr.mxu0 0.0
        %531 = vmatpush1.msra.mxu0 0.0
        %532 = vmatprep.subr.mxu0 0.0
        %533 = vmatpush1.msra.mxu0 0.0
        %534 = vmatprep.subr.mxu0 0.0
        %535 = vmatpush1.msra.mxu0 0.0
        %536 = vmatprep.subr.mxu0 0.0
        %537 = vmatpush1.msra.mxu0 0.0
        %538 = vmatprep.subr.mxu0 0.0
        %539 = vmatpush1.msra.mxu0 0.0
        %540 = vmatprep.subr.mxu0 0.0
        %541 = vmatpush1.msra.mxu0 %v506
        %542 = vmatprep.subr.mxu0 0.0
        %543 = vmatpush1.msra.mxu0 %v504
        %544 = vmatprep.subr.mxu0 0.0
        %545 = vmatpush2.msra.mxu0 0.0
        %546 = vmatprep.subr.mxu0 0.0
        %547 = vmatpush2.msra.mxu0 0.0
        %548 = vmatprep.subr.mxu0 0.0
        %549 = vmatpush2.msra.mxu0 0.0
        %550 = vmatprep.subr.mxu0 0.0
        %551 = vmatpush2.msra.mxu0 0.0
        %552 = vmatprep.subr.mxu0 0.0
        %553 = vmatpush2.msra.mxu0 0.0
        %554 = vmatprep.subr.mxu0 0.0
        %555 = vmatpush2.msra.mxu0 0.0
        %556 = vmatprep.subr.mxu0 0.0
        %557 = vmatpush2.msra.mxu0 0.0
        %558 = vmatprep.subr.mxu0 0.0
        %559 = vmatpush2.msra.mxu0 0.0
        %560 = vmatprep.subr.mxu0 0.0
        %561 = vmatpush2.msra.mxu0 0.0
        %562 = vmatprep.subr.mxu0 0.0
        %563 = vmatpush2.msra.mxu0 0.0
        %564 = vmatprep.subr.mxu0 0.0
        %565 = vmatpush2.msra.mxu0 0.0
        %566 = vmatprep.subr.mxu0 0.0
        %567 = vmatpush2.msra.mxu0 0.0
        %568 = vmatprep.subr.mxu0 0.0
        %569 = vmatpush2.msra.mxu0 0.0
        %570 = vmatprep.subr.mxu0 0.0
        %571 = vmatpush2.msra.mxu0 0.0
        %572 = vmatprep.subr.mxu0 0.0
        %573 = vmatpush2.msra.mxu0 0.0
        %574 = vmatprep.subr.mxu0 0.0
        %575 = vmatpush2.msra.mxu0 0.0
        %576 = vmatprep.mubr.f32.mxu0 0.0
        %577 = vmatmul.mubr.f32.gmra.mxu0 %v510
        %v578 = vpop.f32.mrf.mxu0
        %v579 = vadd.f32 0.0, %v578
        %v580 = vpop.f32.mrf.mxu0
        %581 = vdwg.mxu0
        %v582 = vrcp.pop %v500
        %v583 = vmul.f32 %v579, %v582
        %584 = vrot.lane.b32.xlu0 %v244, 112
        %v585 = vpop.permute.xlu0 %584
        %586 = vrot.lane.b32.xlu0 %v240, 112
        %v587 = vpop.permute.xlu0 %586
        %588 = vrot.lane.b32.xlu0 %v241, 112
        %v589 = vpop.permute.xlu0 %588
        %v590 = vsel %vm245, %v585, 0
        %v592 = vsel %vm245, %v587, 0
        %v594 = vsel %vm245, %v589, 0
        %596 = vmatprep.subr.mxu0 0.0
        %597 = vmatpush1.xpose.msra.mxu0 0.0
        %598 = vmatprep.subr.mxu0 0.0
        %599 = vmatpush1.xpose.msra.mxu0 0.0
        %600 = vmatprep.subr.mxu0 0.0
        %601 = vmatpush1.xpose.msra.mxu0 0.0
        %602 = vmatprep.subr.mxu0 0.0
        %603 = vmatpush1.xpose.msra.mxu0 0.0
        %604 = vmatprep.subr.mxu0 0.0
        %605 = vmatpush1.xpose.msra.mxu0 0.0
        %606 = vmatprep.subr.mxu0 0.0
        %607 = vmatpush1.xpose.msra.mxu0 0.0
        %608 = vmatprep.subr.mxu0 0.0
        %609 = vmatpush1.xpose.msra.mxu0 0.0
        %610 = vmatprep.subr.mxu0 0.0
        %611 = vmatpush1.xpose.msra.mxu0 0.0
        %612 = vmatprep.subr.mxu0 0.0
        %613 = vmatpush1.xpose.msra.mxu0 0.0
        %614 = vmatprep.subr.mxu0 0.0
        %615 = vmatpush1.xpose.msra.mxu0 0.0
        %616 = vmatprep.subr.mxu0 0.0
        %617 = vmatpush1.xpose.msra.mxu0 0.0
        %618 = vmatprep.subr.mxu0 0.0
        %619 = vmatpush1.xpose.msra.mxu0 0.0
        %620 = vmatprep.subr.mxu0 0.0
        %621 = vmatpush1.xpose.msra.mxu0 0.0
        %622 = vmatprep.subr.mxu0 0.0
        %623 = vmatpush1.xpose.msra.mxu0 0.0
        %624 = vmatprep.subr.mxu0 0.0
        %625 = vmatpush1.xpose.msra.mxu0 %v594
        %626 = vmatprep.subr.mxu0 0.0
        %627 = vmatpush1.xpose.msra.mxu0 %v592
        %628 = vmatprep.subr.mxu0 0.0
        %629 = vmatpush2.xpose.msra.mxu0 0.0
        %630 = vmatprep.subr.mxu0 0.0
        %631 = vmatpush2.xpose.msra.mxu0 0.0
        %632 = vmatprep.subr.mxu0 0.0
        %633 = vmatpush2.xpose.msra.mxu0 0.0
        %634 = vmatprep.subr.mxu0 0.0
        %635 = vmatpush2.xpose.msra.mxu0 0.0
        %636 = vmatprep.subr.mxu0 0.0
        %637 = vmatpush2.xpose.msra.mxu0 0.0
        %638 = vmatprep.subr.mxu0 0.0
        %639 = vmatpush2.xpose.msra.mxu0 0.0
        %640 = vmatprep.subr.mxu0 0.0
        %641 = vmatpush2.xpose.msra.mxu0 0.0
        %642 = vmatprep.subr.mxu0 0.0
        %643 = vmatpush2.xpose.msra.mxu0 0.0
        %644 = vmatprep.subr.mxu0 0.0
        %645 = vmatpush2.xpose.msra.mxu0 0.0
        %646 = vmatprep.subr.mxu0 0.0
        %647 = vmatpush2.xpose.msra.mxu0 0.0
        %648 = vmatprep.subr.mxu0 0.0
        %649 = vmatpush2.xpose.msra.mxu0 0.0
        %650 = vmatprep.subr.mxu0 0.0
        %651 = vmatpush2.xpose.msra.mxu0 0.0
        %652 = vmatprep.subr.mxu0 0.0
        %653 = vmatpush2.xpose.msra.mxu0 0.0
        %654 = vmatprep.subr.mxu0 0.0
        %655 = vmatpush2.xpose.msra.mxu0 0.0
        %656 = vmatprep.subr.mxu0 0.0
        %657 = vmatpush2.xpose.msra.mxu0 0.0
        %658 = vmatprep.subr.mxu0 0.0
        %659 = vmatpush2.xpose.msra.mxu0 0.0
        %660 = vmatprep.mubr.f32.mxu0 0.0
        %661 = vmatmul.mubr.f32.gmra.mxu0 %v590
        %v662 = vpop.f32.mrf.mxu0
        %v663 = vadd.f32 0.0, %v662
        %v664 = vpop.f32.mrf.mxu0
        %665 = vdwg.mxu0
        %v666 = vsel %vm325, %v663, -inf
        %667 = vmax.xlane.f32.xlu0 %v666
        %v668 = vpop.xlane.xlu0 %667
        %v669 = vsub.f32 %v663, %v668
        %v670 = vmul.f32 %v669, 1.442695
        %v671 = vpow.pop %v670
        %v672 = vsel %vm325, %v671, 0.0
        %673 = vadd.xlane.f32.xlu0 %v672
        %v674 = vpop.xlane.xlu0 %673
        %675 = vrot.lane.b32.xlu0 %v242, 112
        %v676 = vpop.permute.xlu0 %675
        %677 = vrot.lane.b32.xlu0 %v243, 112
        %v678 = vpop.permute.xlu0 %677
        %v682 = vsel %vm325, %v671, 0
        %684 = vmatprep.subr.mxu0 0.0
        %685 = vmatpush1.msra.mxu0 0.0
        %686 = vmatprep.subr.mxu0 0.0
        %687 = vmatpush1.msra.mxu0 0.0
        %688 = vmatprep.subr.mxu0 0.0
        %689 = vmatpush1.msra.mxu0 0.0
        %690 = vmatprep.subr.mxu0 0.0
        %691 = vmatpush1.msra.mxu0 0.0
        %692 = vmatprep.subr.mxu0 0.0
        %693 = vmatpush1.msra.mxu0 0.0
        %694 = vmatprep.subr.mxu0 0.0
        %695 = vmatpush1.msra.mxu0 0.0
        %696 = vmatprep.subr.mxu0 0.0
        %697 = vmatpush1.msra.mxu0 0.0
        %698 = vmatprep.subr.mxu0 0.0
        %699 = vmatpush1.msra.mxu0 0.0
        %700 = vmatprep.subr.mxu0 0.0
        %701 = vmatpush1.msra.mxu0 0.0
        %702 = vmatprep.subr.mxu0 0.0
        %703 = vmatpush1.msra.mxu0 0.0
        %704 = vmatprep.subr.mxu0 0.0
        %705 = vmatpush1.msra.mxu0 0.0
        %706 = vmatprep.subr.mxu0 0.0
        %707 = vmatpush1.msra.mxu0 0.0
        %708 = vmatprep.subr.mxu0 0.0
        %709 = vmatpush1.msra.mxu0 0.0
        %710 = vmatprep.subr.mxu0 0.0
        %711 = vmatpush1.msra.mxu0 0.0
        %712 = vmatprep.subr.mxu0 0.0
        %713 = vmatpush1.msra.mxu0 %v678
        %714 = vmatprep.subr.mxu0 0.0
        %715 = vmatpush1.msra.mxu0 %v676
        %716 = vmatprep.subr.mxu0 0.0
        %717 = vmatpush2.msra.mxu0 0.0
        %718 = vmatprep.subr.mxu0 0.0
        %719 = vmatpush2.msra.mxu0 0.0
        %720 = vmatprep.subr.mxu0 0.0
        %721 = vmatpush2.msra.mxu0 0.0
        %722 = vmatprep.subr.mxu0 0.0
        %723 = vmatpush2.msra.mxu0 0.0
        %724 = vmatprep.subr.mxu0 0.0
        %725 = vmatpush2.msra.mxu0 0.0
        %726 = vmatprep.subr.mxu0 0.0
        %727 = vmatpush2.msra.mxu0 0.0
        %728 = vmatprep.subr.mxu0 0.0
        %729 = vmatpush2.msra.mxu0 0.0
        %730 = vmatprep.subr.mxu0 0.0
        %731 = vmatpush2.msra.mxu0 0.0
        %732 = vmatprep.subr.mxu0 0.0
        %733 = vmatpush2.msra.mxu0 0.0
        %734 = vmatprep.subr.mxu0 0.0
        %735 = vmatpush2.msra.mxu0 0.0
        %736 = vmatprep.subr.mxu0 0.0
        %737 = vmatpush2.msra.mxu0 0.0
        %738 = vmatprep.subr.mxu0 0.0
        %739 = vmatpush2.msra.mxu0 0.0
        %740 = vmatprep.subr.mxu0 0.0
        %741 = vmatpush2.msra.mxu0 0.0
        %742 = vmatprep.subr.mxu0 0.0
        %743 = vmatpush2.msra.mxu0 0.0
        %744 = vmatprep.subr.mxu0 0.0
        %745 = vmatpush2.msra.mxu0 0.0
        %746 = vmatprep.subr.mxu0 0.0
        %747 = vmatpush2.msra.mxu0 0.0
        %748 = vmatprep.mubr.f32.mxu0 0.0
        %749 = vmatmul.mubr.f32.gmra.mxu0 %v682
        %v750 = vpop.f32.mrf.mxu0
        %v751 = vadd.f32 0.0, %v750
        %v752 = vpop.f32.mrf.mxu0
        %753 = vdwg.mxu0
        %v754 = vrcp.pop %v674
        %v755 = vmul.f32 %v751, %v754
        %756 = vrot.lane.b32.xlu0 %v244, 104
        %v757 = vpop.permute.xlu0 %756
        %758 = vrot.lane.b32.xlu0 %v240, 104
        %v759 = vpop.permute.xlu0 %758
        %760 = vrot.lane.b32.xlu0 %v241, 104
        %v761 = vpop.permute.xlu0 %760
        %v762 = vsel %vm245, %v757, 0
        %v764 = vsel %vm245, %v759, 0
        %v766 = vsel %vm245, %v761, 0
        %768 = vmatprep.subr.mxu0 0.0
        %769 = vmatpush1.xpose.msra.mxu0 0.0
        %770 = vmatprep.subr.mxu0 0.0
        %771 = vmatpush1.xpose.msra.mxu0 0.0
        %772 = vmatprep.subr.mxu0 0.0
        %773 = vmatpush1.xpose.msra.mxu0 0.0
        %774 = vmatprep.subr.mxu0 0.0
        %775 = vmatpush1.xpose.msra.mxu0 0.0
        %776 = vmatprep.subr.mxu0 0.0
        %777 = vmatpush1.xpose.msra.mxu0 0.0
        %778 = vmatprep.subr.mxu0 0.0
        %779 = vmatpush1.xpose.msra.mxu0 0.0
        %780 = vmatprep.subr.mxu0 0.0
        %781 = vmatpush1.xpose.msra.mxu0 0.0
        %782 = vmatprep.subr.mxu0 0.0
        %783 = vmatpush1.xpose.msra.mxu0 0.0
        %784 = vmatprep.subr.mxu0 0.0
        %785 = vmatpush1.xpose.msra.mxu0 0.0
        %786 = vmatprep.subr.mxu0 0.0
        %787 = vmatpush1.xpose.msra.mxu0 0.0
        %788 = vmatprep.subr.mxu0 0.0
        %789 = vmatpush1.xpose.msra.mxu0 0.0
        %790 = vmatprep.subr.mxu0 0.0
        %791 = vmatpush1.xpose.msra.mxu0 0.0
        %792 = vmatprep.subr.mxu0 0.0
        %793 = vmatpush1.xpose.msra.mxu0 0.0
        %794 = vmatprep.subr.mxu0 0.0
        %795 = vmatpush1.xpose.msra.mxu0 0.0
        %796 = vmatprep.subr.mxu0 0.0
        %797 = vmatpush1.xpose.msra.mxu0 %v766
        %798 = vmatprep.subr.mxu0 0.0
        %799 = vmatpush1.xpose.msra.mxu0 %v764
        %800 = vmatprep.subr.mxu0 0.0
        %801 = vmatpush2.xpose.msra.mxu0 0.0
        %802 = vmatprep.subr.mxu0 0.0
        %803 = vmatpush2.xpose.msra.mxu0 0.0
        %804 = vmatprep.subr.mxu0 0.0
        %805 = vmatpush2.xpose.msra.mxu0 0.0
        %806 = vmatprep.subr.mxu0 0.0
        %807 = vmatpush2.xpose.msra.mxu0 0.0
        %808 = vmatprep.subr.mxu0 0.0
        %809 = vmatpush2.xpose.msra.mxu0 0.0
        %810 = vmatprep.subr.mxu0 0.0
        %811 = vmatpush2.xpose.msra.mxu0 0.0
        %812 = vmatprep.subr.mxu0 0.0
        %813 = vmatpush2.xpose.msra.mxu0 0.0
        %814 = vmatprep.subr.mxu0 0.0
        %815 = vmatpush2.xpose.msra.mxu0 0.0
        %816 = vmatprep.subr.mxu0 0.0
        %817 = vmatpush2.xpose.msra.mxu0 0.0
        %818 = vmatprep.subr.mxu0 0.0
        %819 = vmatpush2.xpose.msra.mxu0 0.0
        %820 = vmatprep.subr.mxu0 0.0
        %821 = vmatpush2.xpose.msra.mxu0 0.0
        %822 = vmatprep.subr.mxu0 0.0
        %823 = vmatpush2.xpose.msra.mxu0 0.0
        %824 = vmatprep.subr.mxu0 0.0
        %825 = vmatpush2.xpose.msra.mxu0 0.0
        %826 = vmatprep.subr.mxu0 0.0
        %827 = vmatpush2.xpose.msra.mxu0 0.0
        %828 = vmatprep.subr.mxu0 0.0
        %829 = vmatpush2.xpose.msra.mxu0 0.0
        %830 = vmatprep.subr.mxu0 0.0
        %831 = vmatpush2.xpose.msra.mxu0 0.0
        %832 = vmatprep.mubr.f32.mxu0 0.0
        %833 = vmatmul.mubr.f32.gmra.mxu0 %v762
        %v834 = vpop.f32.mrf.mxu0
        %v835 = vadd.f32 0.0, %v834
        %v836 = vpop.f32.mrf.mxu0
        %837 = vdwg.mxu0
        %v838 = vsel %vm325, %v835, -inf
        %839 = vmax.xlane.f32.xlu0 %v838
        %v840 = vpop.xlane.xlu0 %839
        %v841 = vsub.f32 %v835, %v840
        %v842 = vmul.f32 %v841, 1.442695
        %v843 = vpow.pop %v842
        %v844 = vsel %vm325, %v843, 0.0
        %845 = vadd.xlane.f32.xlu0 %v844
        %v846 = vpop.xlane.xlu0 %845
        %847 = vrot.lane.b32.xlu0 %v242, 104
        %v848 = vpop.permute.xlu0 %847
        %849 = vrot.lane.b32.xlu0 %v243, 104
        %v850 = vpop.permute.xlu0 %849
        %v854 = vsel %vm325, %v843, 0
        %856 = vmatprep.subr.mxu0 0.0
        %857 = vmatpush1.msra.mxu0 0.0
        %858 = vmatprep.subr.mxu0 0.0
        %859 = vmatpush1.msra.mxu0 0.0
        %860 = vmatprep.subr.mxu0 0.0
        %861 = vmatpush1.msra.mxu0 0.0
        %862 = vmatprep.subr.mxu0 0.0
        %863 = vmatpush1.msra.mxu0 0.0
        %864 = vmatprep.subr.mxu0 0.0
        %865 = vmatpush1.msra.mxu0 0.0
        %866 = vmatprep.subr.mxu0 0.0
        %867 = vmatpush1.msra.mxu0 0.0
        %868 = vmatprep.subr.mxu0 0.0
        %869 = vmatpush1.msra.mxu0 0.0
        %870 = vmatprep.subr.mxu0 0.0
        %871 = vmatpush1.msra.mxu0 0.0
        %872 = vmatprep.subr.mxu0 0.0
        %873 = vmatpush1.msra.mxu0 0.0
        %874 = vmatprep.subr.mxu0 0.0
        %875 = vmatpush1.msra.mxu0 0.0
        %876 = vmatprep.subr.mxu0 0.0
        %877 = vmatpush1.msra.mxu0 0.0
        %878 = vmatprep.subr.mxu0 0.0
        %879 = vmatpush1.msra.mxu0 0.0
        %880 = vmatprep.subr.mxu0 0.0
        %881 = vmatpush1.msra.mxu0 0.0
        %882 = vmatprep.subr.mxu0 0.0
        %883 = vmatpush1.msra.mxu0 0.0
        %884 = vmatprep.subr.mxu0 0.0
        %885 = vmatpush1.msra.mxu0 %v850
        %886 = vmatprep.subr.mxu0 0.0
        %887 = vmatpush1.msra.mxu0 %v848
        %888 = vmatprep.subr.mxu0 0.0
        %889 = vmatpush2.msra.mxu0 0.0
        %890 = vmatprep.subr.mxu0 0.0
        %891 = vmatpush2.msra.mxu0 0.0
        %892 = vmatprep.subr.mxu0 0.0
        %893 = vmatpush2.msra.mxu0 0.0
        %894 = vmatprep.subr.mxu0 0.0
        %895 = vmatpush2.msra.mxu0 0.0
        %896 = vmatprep.subr.mxu0 0.0
        %897 = vmatpush2.msra.mxu0 0.0
        %898 = vmatprep.subr.mxu0 0.0
        %899 = vmatpush2.msra.mxu0 0.0
        %900 = vmatprep.subr.mxu0 0.0
        %901 = vmatpush2.msra.mxu0 0.0
        %902 = vmatprep.subr.mxu0 0.0
        %903 = vmatpush2.msra.mxu0 0.0
        %904 = vmatprep.subr.mxu0 0.0
        %905 = vmatpush2.msra.mxu0 0.0
        %906 = vmatprep.subr.mxu0 0.0
        %907 = vmatpush2.msra.mxu0 0.0
        %908 = vmatprep.subr.mxu0 0.0
        %909 = vmatpush2.msra.mxu0 0.0
        %910 = vmatprep.subr.mxu0 0.0
        %911 = vmatpush2.msra.mxu0 0.0
        %912 = vmatprep.subr.mxu0 0.0
        %913 = vmatpush2.msra.mxu0 0.0
        %914 = vmatprep.subr.mxu0 0.0
        %915 = vmatpush2.msra.mxu0 0.0
        %916 = vmatprep.subr.mxu0 0.0
        %917 = vmatpush2.msra.mxu0 0.0
        %918 = vmatprep.subr.mxu0 0.0
        %919 = vmatpush2.msra.mxu0 0.0
        %920 = vmatprep.mubr.f32.mxu0 0.0
        %921 = vmatmul.mubr.f32.gmra.mxu0 %v854
        %v922 = vpop.f32.mrf.mxu0
        %v923 = vadd.f32 0.0, %v922
        %v924 = vpop.f32.mrf.mxu0
        %925 = vdwg.mxu0
        %v926 = vrcp.pop %v846
        %v927 = vmul.f32 %v923, %v926
        %929 = vrot.lane.b32.xlu0 %v583, 8
        %v930 = vpop.permute.xlu0 %929
        %933 = vrot.lane.b32.xlu0 %v755, 16
        %v934 = vpop.permute.xlu0 %933
        %937 = vrot.lane.b32.xlu0 %v927, 24
        %v938 = vpop.permute.xlu0 %937
        %v940 = vsel %vm245, %v409, %v930
        %v941 = vsel %vm325, %v940, %v934
        %vm942 = vcmask 195584
        %v943 = vsel %vm942, %v941, %v938
        %vm944 = vcmask 261120
        %945 = vst.msk [vmem:[%s238] sm:$0xff] %vm944, %v943
        %s946 = sand.u32 %s102, 1
        %s947 = scalar_lea.sflag [#allocation4], %s946
        %s948 = sand.u32 %s102, 1
        %s949 = smul.addr %s948, 8
        %s950 = scalar_lea.vmem [#allocation8], %s949
        // Predicated region
        $region45: #{tpu_custom_call.1} parent=31 // pred_check
          %p951 = pneg %p112
        $region46: #{tpu_custom_call.1} parent=31 // pred_check_branch
          %953 = sbr.rel (%p951) target = $region48
        $region47: #{tpu_custom_call.1} parent=31 // pred_region
          %s955 = ssub.s32 128, 128
          %956 = vsyncadd %s947, %s955
          %s957 = smul.addr %s21, 128
          %s958 = scalar_lea.hbm %s3, %s957
          %s960 = sshll.u32 %s950, 4
          %s961 = int_to_ptr.vmem [resolvable:$true] %s960
          %963 = dma.vmem_to_hbm [thread:$0]  %s961, 128, %s958, %s947
        $region48: #{tpu_custom_call.1} parent=31 // pred_fallthru
          _
      $region32: #{tpu_custom_call.1} parent=5 // pred_fallthru
        _
      %p964 = scmp.le.s32.totalorder 2, %s16
      // Predicated region
      $region49: #{tpu_custom_call.1} parent=5 // pred_check
        %p965 = pneg %p964
      $region50: #{tpu_custom_call.1} parent=5 // pred_check_branch
        %967 = sbr.rel (%p965) target = $region52
      $region51: #{tpu_custom_call.1} parent=5 // pred_region
        %s968 = ssub.s32 %s16, 2
        // Predicated region
        $region53: #{tpu_custom_call.1} parent=51 // pred_check
          %p969 = pneg %p118
        $region54: #{tpu_custom_call.1} parent=51 // pred_check_branch
          %971 = sbr.rel (%p969) target = $region56
        $region55: #{tpu_custom_call.1} parent=51 // pred_region
          %s972 = sand.u32 %s103, 1
          %s973 = scalar_lea.sflag [#allocation4], %s972
          %s974 = sand.u32 %s103, 1
          %s975 = smul.addr %s974, 8
          %s976 = scalar_lea.vmem [#allocation8], %s975
          %977 = dma.done %s973, 128
        $region56: #{tpu_custom_call.1} parent=51 // pred_fallthru
          _
      $region52: #{tpu_custom_call.1} parent=5 // pred_fallthru
        _
    $region6: #{tpu_custom_call.1} parent=1 // loop_footer
      %s20 = sadd.s32 1, %s16
    $region7: #{tpu_custom_call.1} parent=1 // loop_footer_branch
      %15 = sbr.rel target = $region3
    $region8: #{tpu_custom_call.1} parent=1 // loop_exit
      _
    %978 = vsyncpa [#allocation3], 1
    %s979 = scalar_lea.sflag [#allocation3], 1
    %980 = vsyncpa %s979, 1
    %981 = vsyncpa [#allocation6], 1
    %s982 = scalar_lea.sflag [#allocation6], 1
    %983 = vsyncpa %s982, 1
    %984 = vsyncpa [#allocation4], 1
    %s985 = scalar_lea.sflag [#allocation4], 1
    %986 = vsyncpa %s985, 1

</llo_original>
